<compile_context>
chip_gen: v5e
topology: v5e:2x2
jax: 0.10.0
libtpu: 0.0.40
codegen_flags: <defaults>
</compile_context>

<pallas_src>
import functools

import jax
import jax.numpy as jnp
from jax.experimental import pallas as pl
from jax.experimental.pallas import tpu as pltpu

LEAK = 0.2
BN_EPS = 1e-5


def _leaky(x):
    return jnp.where(x > 0, x, LEAK * x)


def _round_up(a, b):
    return (a + b - 1) // b * b


# ------------------------------ Pallas kernel -------------------------------

def fused_discriminator_kernel(x_ref, lab_ref, wc1_ref, wc2_ref, w1c_ref,
                               tail_ref, bias_ref, o_ref, *,
                               class_pad, n1, n2, c2, c3, c4):
    """Whole Discriminator forward on one batch block resident in VMEM.

    x:    (bm, img_x*img_y)         bf16  NCHW-flattened input image block
    lab:  (bm, 1)                   i32   class labels
    wc1:  (img_x*img_y, n1)         bf16  unrolled conv1 (BN1 scale folded)
    wc2:  (n1, n2)                  bf16  unrolled conv2 (BN2 scale folded)
    w1c:  (n2 + class_pad, c2)      bf16  fc1 weight with embedding folded in
    tail: (>= c2+c3+c4 rows, 128)   bf16  packed fc2 / fc3 / fc4 weights
    bias: (8, >=256)                f32   packed per-layer bias rows
    o:    (bm, 1)                   f32   sigmoid probabilities
    """
    f32, bf16 = jnp.float32, jnp.bfloat16
    x = x_ref[...]                                               # bf16

    # conv1 + BatchNorm1 (folded) + LeakyReLU  -> (bm, n1) NCHW-flat features.
    h = jnp.dot(x, wc1_ref[...], preferred_element_type=f32)
    h = _leaky(h + bias_ref[0:1, 0:n1])

    # conv2 + BatchNorm2 (folded) + LeakyReLU  -> (bm, n2) NCHW-flat features
    # (column order already matches torch's x.view(-1, C*H*W)).
    h = jnp.dot(h.astype(bf16), wc2_ref[...], preferred_element_type=f32)
    h = _leaky(h + bias_ref[1:2, 0:n2])

    # Label path: one-hot(label) built in-kernel; embedding + the "concat"
    # half of fc1 are already stacked under the feature half of fc1 (w1c),
    # so [features | onehot] @ w1c is a single MXU dot (concat lands on a
    # 128-lane boundary -> free).
    lab = lab_ref[...]                                           # (bm, 1) i32
    iota = jax.lax.broadcasted_iota(jnp.int32, (lab.shape[0], class_pad), 1)
    onehot = jnp.where(iota == lab, 1.0, 0.0).astype(bf16)       # (bm, pad)
    hcat = jnp.concatenate([h.astype(bf16), onehot], axis=1)     # (bm, n2+pad)

    # fc1 + LeakyReLU   (Dropout(0.3) is identity in eval mode).
    h = jnp.dot(hcat, w1c_ref[...], preferred_element_type=f32)
    h = _leaky(h + bias_ref[2:3, 0:c2])

    # fc2 / fc3 + LeakyReLU   (Dropouts are identity).  Tail weights are
    # static row-slices of one packed VMEM slab.
    w2 = tail_ref[0:c2, 0:c3]
    w3 = tail_ref[c2:c2 + c3, 0:c4]
    w4 = tail_ref[c2 + c3:c2 + c3 + c4, 0:1]
    h = _leaky(jnp.dot(h.astype(bf16), w2, preferred_element_type=f32)
               + bias_ref[3:4, 0:c3])
    h = _leaky(jnp.dot(h.astype(bf16), w3, preferred_element_type=f32)
               + bias_ref[4:5, 0:c4])

    # fc4 + sigmoid (clamped so exp never overflows; reciprocal on the EUP).
    z = (jnp.dot(h.astype(bf16), w4, preferred_element_type=f32)
         + bias_ref[5:6, 0:1])
    z = jnp.clip(z, -30.0, 30.0)
    o_ref[...] = pl.reciprocal(1.0 + jnp.exp(-z), approx=True)


# --------------------------- one-time weight prep ---------------------------

def conv_as_dense(weight_oihw, cin, hin, win, stride=2, pad=1):
    """Unroll Conv2d(k=3, stride=2, pad=1, bias=False) into a dense
    (cin*hin*win, cout*hout*wout) matrix, NCHW-flat on both sides.
    One-time weight preparation (identity-basis trick) — never on the
    per-call path."""
    n_in = cin * hin * win
    basis = jnp.eye(n_in, dtype=jnp.float32).reshape(n_in, cin, hin, win)
    out = jax.lax.conv_general_dilated(
        basis, weight_oihw.astype(jnp.float32),
        window_strides=(stride, stride), padding=((pad, pad), (pad, pad)),
        dimension_numbers=("NCHW", "OIHW", "NCHW"))
    cout, hout, wout = out.shape[1], out.shape[2], out.shape[3]
    dense = out.reshape(n_in, cout * hout * wout)
    # Guard: this path is only sensible while the dense operator is tiny.
    # TODO(synk): swap to in-kernel 9-tap accumulation beyond this limit.
    assert dense.size * 2 < (4 << 20), "unrolled conv operator too large"
    return dense, (cout, hout, wout)


def prepare_params(params, img_x, img_y, channels, class_num):
    """Fold torch-layout parameters into the kernel's pre-transposed bf16
    matmul operands.  Runs once; zero cost on the per-call path."""
    c0, c1, c2, c3, c4 = channels

    def bn_scale_shift(gamma, beta, mean, var):
        scale = gamma / jnp.sqrt(var + BN_EPS)
        return scale, beta - mean * scale

    # conv1 dense operator, BN1 affine folded in.
    wc1, (_, h1, w1) = conv_as_dense(params["conv1_w"], 1, img_x, img_y)
    s1, sh1 = bn_scale_shift(*params["bn1"])
    wc1 = wc1 * jnp.repeat(s1, h1 * w1)[None, :]
    bc1 = jnp.repeat(sh1, h1 * w1)

    # conv2 dense operator, BN2 affine folded in.
    wc2, (_, h2, w2) = conv_as_dense(params["conv2_w"], c0, h1, w1)
    s2, sh2 = bn_scale_shift(*params["bn2"])
    wc2 = wc2 * jnp.repeat(s2, h2 * w2)[None, :]
    bc2 = jnp.repeat(sh2, h2 * w2)

    n1 = c0 * h1 * w1
    n2 = c1 * h2 * w2

    # fc1: image-feature half (columns already in torch NCHW flatten order)
    # stacked on top of (embedding @ label-half), zero-padded so the in-kernel
    # one-hot concat lands at a lane multiple.
    class_pad = _round_up(class_num, 128)
    fc1_w = params["fc1_w"]                       # (c2, n2 + class_emb)
    w1a = fc1_w[:, :n2].T                         # (n2, c2)
    wemb = params["emb"] @ fc1_w[:, n2:].T        # (class_num, c2)
    wemb_pad = jnp.zeros((class_pad, c2), jnp.float32).at[:class_num].set(wemb)
    w1c = jnp.concatenate([w1a, wemb_pad], axis=0)  # (n2 + class_pad, c2)

    # Pack the tail (fc2 / fc3 / fc4) weights into one slab, sliced by static
    # row ranges in-kernel.
    tail_rows = _round_up(c2 + c3 + c4, 8)
    tail = jnp.zeros((tail_rows, 128), jnp.float32)
    tail = tail.at[0:c2, 0:c3].set(params["fc2_w"].T)
    tail = tail.at[c2:c2 + c3, 0:c4].set(params["fc3_w"].T)
    tail = tail.at[c2 + c3:c2 + c3 + c4, 0:1].set(params["fc4_w"].T)

    # Pack all biases / BN shifts into one VMEM operand.
    width = max(256, n1)
    bias_pack = jnp.zeros((8, width), jnp.float32)
    bias_pack = bias_pack.at[0, :n1].set(bc1)
    bias_pack = bias_pack.at[1, :n2].set(bc2)
    bias_pack = bias_pack.at[2, :c2].set(params["fc1_b"])
    bias_pack = bias_pack.at[3, :c3].set(params["fc2_b"])
    bias_pack = bias_pack.at[4, :c4].set(params["fc3_b"])
    bias_pack = bias_pack.at[5, :1].set(params["fc4_b"])

    bf16 = jnp.bfloat16
    return {
        "wc1": wc1.astype(bf16), "wc2": wc2.astype(bf16),
        "w1c": w1c.astype(bf16), "tail": tail.astype(bf16),
        "bias": bias_pack,
        "dims": (n1, n2, c2, c3, c4, class_pad),
    }


# ------------------------------ forward wrapper ------------------------------

def discriminator_forward(prepped, x_nchw, labels, *, block_m=256):
    B = x_nchw.shape[0]
    n1, n2, c2, c3, c4, class_pad = prepped["dims"]
    wc1, wc2, w1c = prepped["wc1"], prepped["wc2"], prepped["w1c"]
    tail, bias_pack = prepped["tail"], prepped["bias"]
    n_in = wc1.shape[0]

    # Ship x in bf16 (the cast fuses with the producer); pad the batch so the
    # grid tiles it exactly.  block rows are a multiple of 16 (bf16 sublane
    # packing) unless the whole padded batch is a single block.
    bm = min(block_m, _round_up(B, 16))
    Bp = _round_up(B, bm)
    x_flat = x_nchw.reshape(B, -1).astype(jnp.bfloat16)   # NCHW flatten (free)
    lab = labels.reshape(B, 1).astype(jnp.int32)
    if Bp != B:
        x_flat = jnp.pad(x_flat, ((0, Bp - B), (0, 0)))
        lab = jnp.pad(lab, ((0, Bp - B), (0, 0)))
    grid = (Bp // bm,)

    kernel = functools.partial(
        fused_discriminator_kernel,
        class_pad=class_pad, n1=n1, n2=n2, c2=c2, c3=c3, c4=c4)

    flops = 2 * Bp * (n_in * n1 + n1 * n2 + (n2 + class_pad) * c2
                      + c2 * c3 + c3 * c4 + c4)
    bytes_accessed = (2 * (x_flat.size + wc1.size + wc2.size + w1c.size
                           + tail.size)
                      + 4 * (lab.size + bias_pack.size + Bp))

    # x / labels / out stream per batch block; all weight operands use a
    # constant index_map so they are fetched once and stay VMEM-resident.
    const2 = lambda i: (0, 0)
    in_specs = [
        pl.BlockSpec((bm, n_in), lambda i: (i, 0)),            # x
        pl.BlockSpec((bm, 1), lambda i: (i, 0)),               # labels
        pl.BlockSpec(wc1.shape, const2),                       # conv1 (folded)
        pl.BlockSpec(wc2.shape, const2),                       # conv2 (folded)
        pl.BlockSpec(w1c.shape, const2),                       # fc1 (+emb)
        pl.BlockSpec(tail.shape, const2),                      # fc2/fc3/fc4
        pl.BlockSpec(bias_pack.shape, const2),                 # biases
    ]
    # TODO(synk): if profiling at very large bm shows store-slot pressure,
    # emit a lane-dense (bm, 128) output slab and slice outside instead.
    out_spec = pl.BlockSpec((bm, 1), lambda i: (i, 0))

    out = pl.pallas_call(
        kernel,
        grid=grid,
        out_shape=jax.ShapeDtypeStruct((Bp, 1), jnp.float32),
        in_specs=in_specs,
        out_specs=out_spec,
        compiler_params=pltpu.CompilerParams(
            dimension_semantics=("parallel",)),
        cost_estimate=pl.CostEstimate(flops=flops, transcendentals=Bp,
                                      bytes_accessed=bytes_accessed),
    )(x_flat, lab, wc1, wc2, w1c, tail, bias_pack)
    return out[:B]


# ------------------------- params / pure-JAX reference -----------------------

def init_params(key, img_x, img_y, class_num, class_emb, channels):
    c0, c1, c2, c3, c4 = channels
    feat = c1 * (img_x // 4) * (img_y // 4) + class_emb
    ks = jax.random.split(key, 11)

    def nrm(k, shape, scale=0.05):
        return (scale * jax.random.normal(k, shape)).astype(jnp.float32)

    ones = lambda n: jnp.ones((n,), jnp.float32)
    zeros = lambda n: jnp.zeros((n,), jnp.float32)
    return {
        "emb": nrm(ks[0], (class_num, class_emb), 1.0),
        "conv1_w": nrm(ks[1], (c0, 1, 3, 3)),          # torch (Cout,Cin,kh,kw)
        "bn1": (ones(c0), zeros(c0), zeros(c0), ones(c0)),
        "conv2_w": nrm(ks[2], (c1, c0, 3, 3)),
        "bn2": (ones(c1), zeros(c1), zeros(c1), ones(c1)),
        "fc1_w": nrm(ks[3], (c2, feat)), "fc1_b": nrm(ks[4], (c2,)),
        "fc2_w": nrm(ks[5], (c3, c2)),   "fc2_b": nrm(ks[6], (c3,)),
        "fc3_w": nrm(ks[7], (c4, c3)),   "fc3_b": nrm(ks[8], (c4,)),
        "fc4_w": nrm(ks[9], (1, c4)),    "fc4_b": nrm(ks[10], (1,)),
    }


def reference_forward(params, x_nchw, labels):
    """Plain-JAX reference matching the torch module (eval mode)."""
    def bn(y, gamma, beta, mean, var):
        s = gamma / jnp.sqrt(var + BN_EPS)
        return y * s[None, :, None, None] + (beta - mean * s)[None, :, None, None]

    def conv(y, w):
        return jax.lax.conv_general_dilated(
            y, w, window_strides=(2, 2), padding=((1, 1), (1, 1)),
            dimension_numbers=("NCHW", "OIHW", "NCHW"))

    y = _leaky(bn(conv(x_nchw, params["conv1_w"]), *params["bn1"]))
    y = _leaky(bn(conv(y, params["conv2_w"]), *params["bn2"]))
    flat = y.reshape(y.shape[0], -1)
    condn = params["emb"][labels]
    feat = jnp.concatenate([flat, condn], axis=1)
    h = _leaky(feat @ params["fc1_w"].T + params["fc1_b"])
    h = _leaky(h @ params["fc2_w"].T + params["fc2_b"])
    h = _leaky(h @ params["fc3_w"].T + params["fc3_b"])
    z = h @ params["fc4_w"].T + params["fc4_b"]
    return jax.nn.sigmoid(z)


if __name__ == "__main__":
    img_x, img_y = 16, 16
    class_num, class_emb = 10, 8
    discriminator_channels = [4, 8, 32, 16, 8]
    B = 2

    key = jax.random.PRNGKey(0)
    kp, kx, kl = jax.random.split(key, 3)
    params = init_params(kp, img_x, img_y, class_num, class_emb,
                         discriminator_channels)
    x = jax.random.normal(kx, (B, 1, img_x, img_y), dtype=jnp.float32)  # NCHW
    labels = jax.random.randint(kl, (B,), 0, class_num, dtype=jnp.int32)

    # One-time weight folding (outside the per-call path).
    prepped = prepare_params(params, img_x, img_y, discriminator_channels,
                             class_num)

    out = discriminator_forward(prepped, x, labels)
    out = jax.block_until_ready(out)

    ref = reference_forward(params, x, labels)
    assert out.shape == (B, 1)
    assert bool(jnp.all((out >= 0.0) & (out <= 1.0)))
    assert bool(jnp.allclose(out, ref, atol=2e-2)), (out, ref)
    print("KERNEL_OK")
</pallas_src>

<mosaic_0001>
module attributes {stable_mosaic.version = 11 : i64} {
  func.func @fused_discriminator_kernel(%arg0: i32, %arg1: memref<16x256xbf16, #tpu.memory_space<vmem>>, %arg2: memref<16x1xi32, #tpu.memory_space<vmem>>, %arg3: memref<256x256xbf16, #tpu.memory_space<vmem>>, %arg4: memref<256x128xbf16, #tpu.memory_space<vmem>>, %arg5: memref<256x32xbf16, #tpu.memory_space<vmem>>, %arg6: memref<56x128xbf16, #tpu.memory_space<vmem>>, %arg7: memref<8x256xf32, #tpu.memory_space<vmem>>, %arg8: memref<16x1xf32, #tpu.memory_space<vmem>>) attributes {dimension_semantics = [#tpu.dimension_semantics<parallel>], iteration_bounds = array<i64: 1>, scalar_prefetch = 0 : i64, scratch_operands = 0 : i64, tpu.core_type = #tpu.core_type<tc>, window_params = [{transform_indices = @transform_0, window_bounds = array<i64: 16, 256>}, {transform_indices = @transform_1, window_bounds = array<i64: 16, 1>}, {pipeline_mode = #tpu.pipeline_mode<synchronous>, transform_indices = @transform_2, window_bounds = array<i64: 256, 256>}, {pipeline_mode = #tpu.pipeline_mode<synchronous>, transform_indices = @transform_3, window_bounds = array<i64: 256, 128>}, {pipeline_mode = #tpu.pipeline_mode<synchronous>, transform_indices = @transform_4, window_bounds = array<i64: 256, 32>}, {pipeline_mode = #tpu.pipeline_mode<synchronous>, transform_indices = @transform_5, window_bounds = array<i64: 56, 128>}, {pipeline_mode = #tpu.pipeline_mode<synchronous>, transform_indices = @transform_6, window_bounds = array<i64: 8, 256>}, {transform_indices = @transform_7, window_bounds = array<i64: 16, 1>}]} {
    %c0 = arith.constant 0 : index
    %c0_0 = arith.constant 0 : index
    %0 = vector.load %arg1[%c0, %c0_0] : memref<16x256xbf16, #tpu.memory_space<vmem>>, vector<16x256xbf16>
    %c0_1 = arith.constant 0 : index
    %c0_2 = arith.constant 0 : index
    %1 = vector.load %arg3[%c0_1, %c0_2] : memref<256x256xbf16, #tpu.memory_space<vmem>>, vector<256x256xbf16>
    %cst = arith.constant dense<0.000000e+00> : vector<16x256xf32>
    %2 = tpu.matmul %0, %1, %cst {dimension_numbers = #tpu.dot_dimension_numbers<[1], [0], [0], [1], [0, 0, 1, 1], [], []>} : vector<16x256xbf16>, vector<256x256xbf16>, vector<16x256xf32> -> vector<16x256xf32>
    %c0_3 = arith.constant 0 : index
    %c0_4 = arith.constant 0 : index
    %3 = vector.load %arg7[%c0_3, %c0_4] : memref<8x256xf32, #tpu.memory_space<vmem>>, vector<1x256xf32>
    %4 = vector.broadcast %3 : vector<1x256xf32> to vector<16x256xf32>
    %5 = arith.addf %2, %4 : vector<16x256xf32>
    %cst_5 = arith.constant 0.000000e+00 : f32
    %6 = vector.broadcast %cst_5 : f32 to vector<16x256xf32>
    %7 = arith.cmpf ogt, %5, %6 : vector<16x256xf32>
    %cst_6 = arith.constant 2.000000e-01 : f32
    %8 = vector.broadcast %cst_6 : f32 to vector<16x256xf32>
    %9 = arith.mulf %8, %5 : vector<16x256xf32>
    %10 = arith.select %7, %5, %9 : vector<16x256xi1>, vector<16x256xf32>
    %11 = arith.truncf %10 : vector<16x256xf32> to vector<16x256xbf16>
    %c0_7 = arith.constant 0 : index
    %c0_8 = arith.constant 0 : index
    %12 = vector.load %arg4[%c0_7, %c0_8] : memref<256x128xbf16, #tpu.memory_space<vmem>>, vector<256x128xbf16>
    %cst_9 = arith.constant dense<0.000000e+00> : vector<16x128xf32>
    %13 = tpu.matmul %11, %12, %cst_9 {dimension_numbers = #tpu.dot_dimension_numbers<[1], [0], [0], [1], [0, 0, 1, 1], [], []>} : vector<16x256xbf16>, vector<256x128xbf16>, vector<16x128xf32> -> vector<16x128xf32>
    %c1 = arith.constant 1 : index
    %c0_10 = arith.constant 0 : index
    %14 = vector.load %arg7[%c1, %c0_10] : memref<8x256xf32, #tpu.memory_space<vmem>>, vector<1x128xf32>
    %15 = vector.broadcast %14 : vector<1x128xf32> to vector<16x128xf32>
    %16 = arith.addf %13, %15 : vector<16x128xf32>
    %cst_11 = arith.constant 0.000000e+00 : f32
    %17 = vector.broadcast %cst_11 : f32 to vector<16x128xf32>
    %18 = arith.cmpf ogt, %16, %17 : vector<16x128xf32>
    %cst_12 = arith.constant 2.000000e-01 : f32
    %19 = vector.broadcast %cst_12 : f32 to vector<16x128xf32>
    %20 = arith.mulf %19, %16 : vector<16x128xf32>
    %21 = arith.select %18, %16, %20 : vector<16x128xi1>, vector<16x128xf32>
    %c0_13 = arith.constant 0 : index
    %c0_14 = arith.constant 0 : index
    %22 = vector.load %arg2[%c0_13, %c0_14] : memref<16x1xi32, #tpu.memory_space<vmem>>, vector<16x1xi32>
    %23 = tpu.iota {dimensions = array<i32: 1>} : vector<16x128xi32>
    %24 = vector.broadcast %22 : vector<16x1xi32> to vector<16x128xi32>
    %25 = arith.cmpi eq, %23, %24 : vector<16x128xi32>
    %cst_15 = arith.constant 1.000000e+00 : f32
    %cst_16 = arith.constant 0.000000e+00 : f32
    %26 = vector.broadcast %cst_15 : f32 to vector<16x128xf32>
    %27 = vector.broadcast %cst_16 : f32 to vector<16x128xf32>
    %28 = arith.select %25, %26, %27 : vector<16x128xi1>, vector<16x128xf32>
    %29 = arith.truncf %28 : vector<16x128xf32> to vector<16x128xbf16>
    %30 = arith.truncf %21 : vector<16x128xf32> to vector<16x128xbf16>
    %31 = tpu.concatenate %30, %29 in 1 : vector<16x128xbf16>, vector<16x128xbf16> -> vector<16x256xbf16>
    %c0_17 = arith.constant 0 : index
    %c0_18 = arith.constant 0 : index
    %32 = vector.load %arg5[%c0_17, %c0_18] : memref<256x32xbf16, #tpu.memory_space<vmem>>, vector<256x32xbf16>
    %cst_19 = arith.constant dense<0.000000e+00> : vector<16x32xf32>
    %33 = tpu.matmul %31, %32, %cst_19 {dimension_numbers = #tpu.dot_dimension_numbers<[1], [0], [0], [1], [0, 0, 1, 1], [], []>} : vector<16x256xbf16>, vector<256x32xbf16>, vector<16x32xf32> -> vector<16x32xf32>
    %c2 = arith.constant 2 : index
    %c0_20 = arith.constant 0 : index
    %34 = vector.load %arg7[%c2, %c0_20] : memref<8x256xf32, #tpu.memory_space<vmem>>, vector<1x32xf32>
    %35 = vector.broadcast %34 : vector<1x32xf32> to vector<16x32xf32>
    %36 = arith.addf %33, %35 : vector<16x32xf32>
    %cst_21 = arith.constant 0.000000e+00 : f32
    %37 = vector.broadcast %cst_21 : f32 to vector<16x32xf32>
    %38 = arith.cmpf ogt, %36, %37 : vector<16x32xf32>
    %cst_22 = arith.constant 2.000000e-01 : f32
    %39 = vector.broadcast %cst_22 : f32 to vector<16x32xf32>
    %40 = arith.mulf %39, %36 : vector<16x32xf32>
    %41 = arith.select %38, %36, %40 : vector<16x32xi1>, vector<16x32xf32>
    %c0_23 = arith.constant 0 : index
    %c0_24 = arith.constant 0 : index
    %42 = vector.load %arg6[%c0_23, %c0_24] : memref<56x128xbf16, #tpu.memory_space<vmem>>, vector<32x16xbf16>
    %c32 = arith.constant 32 : index
    %c0_25 = arith.constant 0 : index
    %43 = vector.load %arg6[%c32, %c0_25] : memref<56x128xbf16, #tpu.memory_space<vmem>>, vector<16x8xbf16>
    %c48 = arith.constant 48 : index
    %c0_26 = arith.constant 0 : index
    %44 = vector.load %arg6[%c48, %c0_26] : memref<56x128xbf16, #tpu.memory_space<vmem>>, vector<8x1xbf16>
    %45 = arith.truncf %41 : vector<16x32xf32> to vector<16x32xbf16>
    %cst_27 = arith.constant dense<0.000000e+00> : vector<16x16xf32>
    %46 = tpu.matmul %45, %42, %cst_27 {dimension_numbers = #tpu.dot_dimension_numbers<[1], [0], [0], [1], [0, 0, 1, 1], [], []>} : vector<16x32xbf16>, vector<32x16xbf16>, vector<16x16xf32> -> vector<16x16xf32>
    %c3 = arith.constant 3 : index
    %c0_28 = arith.constant 0 : index
    %47 = vector.load %arg7[%c3, %c0_28] : memref<8x256xf32, #tpu.memory_space<vmem>>, vector<1x16xf32>
    %48 = vector.broadcast %47 : vector<1x16xf32> to vector<16x16xf32>
    %49 = arith.addf %46, %48 : vector<16x16xf32>
    %cst_29 = arith.constant 0.000000e+00 : f32
    %50 = vector.broadcast %cst_29 : f32 to vector<16x16xf32>
    %51 = arith.cmpf ogt, %49, %50 : vector<16x16xf32>
    %cst_30 = arith.constant 2.000000e-01 : f32
    %52 = vector.broadcast %cst_30 : f32 to vector<16x16xf32>
    %53 = arith.mulf %52, %49 : vector<16x16xf32>
    %54 = arith.select %51, %49, %53 : vector<16x16xi1>, vector<16x16xf32>
    %55 = arith.truncf %54 : vector<16x16xf32> to vector<16x16xbf16>
    %cst_31 = arith.constant dense<0.000000e+00> : vector<16x8xf32>
    %56 = tpu.matmul %55, %43, %cst_31 {dimension_numbers = #tpu.dot_dimension_numbers<[1], [0], [0], [1], [0, 0, 1, 1], [], []>} : vector<16x16xbf16>, vector<16x8xbf16>, vector<16x8xf32> -> vector<16x8xf32>
    %c4 = arith.constant 4 : index
    %c0_32 = arith.constant 0 : index
    %57 = vector.load %arg7[%c4, %c0_32] : memref<8x256xf32, #tpu.memory_space<vmem>>, vector<1x8xf32>
    %58 = vector.broadcast %57 : vector<1x8xf32> to vector<16x8xf32>
    %59 = arith.addf %56, %58 : vector<16x8xf32>
    %cst_33 = arith.constant 0.000000e+00 : f32
    %60 = vector.broadcast %cst_33 : f32 to vector<16x8xf32>
    %61 = arith.cmpf ogt, %59, %60 : vector<16x8xf32>
    %cst_34 = arith.constant 2.000000e-01 : f32
    %62 = vector.broadcast %cst_34 : f32 to vector<16x8xf32>
    %63 = arith.mulf %62, %59 : vector<16x8xf32>
    %64 = arith.select %61, %59, %63 : vector<16x8xi1>, vector<16x8xf32>
    %65 = arith.truncf %64 : vector<16x8xf32> to vector<16x8xbf16>
    %cst_35 = arith.constant dense<0.000000e+00> : vector<16x1xf32>
    %66 = tpu.matmul %65, %44, %cst_35 {dimension_numbers = #tpu.dot_dimension_numbers<[1], [0], [0], [1], [0, 0, 1, 1], [], []>} : vector<16x8xbf16>, vector<8x1xbf16>, vector<16x1xf32> -> vector<16x1xf32>
    %c5 = arith.constant 5 : index
    %c0_36 = arith.constant 0 : index
    %67 = vector.load %arg7[%c5, %c0_36] : memref<8x256xf32, #tpu.memory_space<vmem>>, vector<1x1xf32>
    %68 = vector.broadcast %67 : vector<1x1xf32> to vector<16x1xf32>
    %69 = arith.addf %66, %68 : vector<16x1xf32>
    %cst_37 = arith.constant -3.000000e+01 : f32
    %cst_38 = arith.constant 3.000000e+01 : f32
    %70 = vector.broadcast %cst_37 : f32 to vector<16x1xf32>
    %71 = arith.maximumf %70, %69 : vector<16x1xf32>
    %72 = vector.broadcast %cst_38 : f32 to vector<16x1xf32>
    %73 = arith.minimumf %72, %71 : vector<16x1xf32>
    %cst_39 = arith.constant 0.000000e+00 : f32
    %74 = vector.broadcast %cst_39 : f32 to vector<16x1xf32>
    %75 = arith.subf %74, %73 : vector<16x1xf32>
    %76 = math.exp %75 : vector<16x1xf32>
    %cst_40 = arith.constant 1.000000e+00 : f32
    %77 = vector.broadcast %cst_40 : f32 to vector<16x1xf32>
    %78 = arith.addf %77, %76 : vector<16x1xf32>
    %79 = tpu.reciprocal %78 {approx = true} : vector<16x1xf32> -> vector<16x1xf32>
    %c0_41 = arith.constant 0 : index
    %c0_42 = arith.constant 0 : index
    %80 = vector.load %arg8[%c0_41, %c0_42] : memref<16x1xf32, #tpu.memory_space<vmem>>, vector<16x1xf32>
    tpu.vector_store %arg8[%c0_41, %c0_42], %79 {strides = array<i32>} : memref<16x1xf32, #tpu.memory_space<vmem>>, vector<16x1xf32>,
    return
  }
  func.func @transform_0(%arg0: i32) -> (i32, i32) {
    %c0_i32 = arith.constant 0 : i32
    %c0_i32_0 = arith.constant 0 : i32
    return %arg0, %c0_i32 : i32, i32
  }
  func.func @transform_1(%arg0: i32) -> (i32, i32) {
    %c0_i32 = arith.constant 0 : i32
    %c0_i32_0 = arith.constant 0 : i32
    return %arg0, %c0_i32 : i32, i32
  }
  func.func @transform_2(%arg0: i32) -> (i32, i32) {
    %c0_i32 = arith.constant 0 : i32
    %c0_i32_0 = arith.constant 0 : i32
    %c0_i32_1 = arith.constant 0 : i32
    return %c0_i32, %c0_i32_0 : i32, i32
  }
  func.func @transform_3(%arg0: i32) -> (i32, i32) {
    %c0_i32 = arith.constant 0 : i32
    %c0_i32_0 = arith.constant 0 : i32
    %c0_i32_1 = arith.constant 0 : i32
    return %c0_i32, %c0_i32_0 : i32, i32
  }
  func.func @transform_4(%arg0: i32) -> (i32, i32) {
    %c0_i32 = arith.constant 0 : i32
    %c0_i32_0 = arith.constant 0 : i32
    %c0_i32_1 = arith.constant 0 : i32
    return %c0_i32, %c0_i32_0 : i32, i32
  }
  func.func @transform_5(%arg0: i32) -> (i32, i32) {
    %c0_i32 = arith.constant 0 : i32
    %c0_i32_0 = arith.constant 0 : i32
    %c0_i32_1 = arith.constant 0 : i32
    return %c0_i32, %c0_i32_0 : i32, i32
  }
  func.func @transform_6(%arg0: i32) -> (i32, i32) {
    %c0_i32 = arith.constant 0 : i32
    %c0_i32_0 = arith.constant 0 : i32
    %c0_i32_1 = arith.constant 0 : i32
    return %c0_i32, %c0_i32_0 : i32, i32
  }
  func.func @transform_7(%arg0: i32) -> (i32, i32) {
    %c0_i32 = arith.constant 0 : i32
    %c0_i32_0 = arith.constant 0 : i32
    return %arg0, %c0_i32 : i32, i32
  }
}

</mosaic_0001>

<llo_original>
// kernel: tpu_custom_call.1
$region0: #{tpu_custom_call.1}
  #allocation0 [shape = 'u32[]', space=smem, size = 0x4, offset = 0x4, fixed_abs, tag = 'smem constant byte address 0x4 - core index']
  #allocation1 [shape = 'u32[72,128]{1,0:T(1,128)}', space=vmem, size = 0x9000, scoped, tag = 'internal scratch']
  %s0 = inlined_call_operand.vmem [shape: bf16[16,256], index: 0, kind: input, shape index: {}]
  %s1 = inlined_call_operand.vmem [shape: s32[16,1], index: 1, kind: input, shape index: {}]
  %s2 = inlined_call_operand.hbm [shape: bf16[256,256], index: 2, kind: input, shape index: {}]
  %s3 = inlined_call_operand.vmem [shape: bf16[256,128], index: 3, kind: input, shape index: {}]
  %s4 = inlined_call_operand.vmem [shape: bf16[256,32], index: 4, kind: input, shape index: {}]
  %s5 = inlined_call_operand.vmem [shape: bf16[56,128], index: 5, kind: input, shape index: {}]
  %s6 = inlined_call_operand.hbm [shape: f32[8,256], index: 6, kind: input, shape index: {}]
  %s7 = inlined_call_operand.vmem [shape: f32[16,1], index: 7, kind: output, shape index: {}]
  %s8 = sld [smem:[#allocation0]]
  $region46: #{tpu_custom_call.1} parent=0
    _
  %s10 = ssub.s32 1, %s8
  %s11 = scalar_select 0, %s10, %s8
  $region1: #{tpu_custom_call.1} parent=0
    #allocation2 [shape = 'u8[131072]{0}', space=vmem, size = 0x20000, scoped, tag = 'input window, operand 2, single buffered']
    #allocation3 [shape = 's32[1]{0}', space=sflag, size = 0x4, scoped, tag = 'scoped memory for tpu_custom_call.1']
    #allocation4 [shape = 'u8[8192]{0}', space=vmem, size = 0x2000, scoped, tag = 'input window, operand 6, single buffered']
    #allocation5 [shape = 's32[1]{0}', space=sflag, size = 0x4, scoped, tag = 'scoped memory for tpu_custom_call.1']
    %12 = vsyncpa [#allocation3], 0
    %13 = vsyncpa [#allocation5], 0
    // Predicated region
    $region2: #{tpu_custom_call.1} parent=1 // pred_check
      _
    $region3: #{tpu_custom_call.1} parent=1 // pred_check_branch
      %15 = sbr.rel (0) target = $region5
    $region4: #{tpu_custom_call.1} parent=1 // pred_region
      _
    $region5: #{tpu_custom_call.1} parent=1 // pred_fallthru
      _
    // Predicated region
    $region6: #{tpu_custom_call.1} parent=1 // pred_check
      _
    $region7: #{tpu_custom_call.1} parent=1 // pred_check_branch
      %17 = sbr.rel (0) target = $region9
    $region8: #{tpu_custom_call.1} parent=1 // pred_region
      _
    $region9: #{tpu_custom_call.1} parent=1 // pred_fallthru
      _
    // Predicated region
    $region10: #{tpu_custom_call.1} parent=1 // pred_check
      _
    $region11: #{tpu_custom_call.1} parent=1 // pred_check_branch
      %19 = sbr.rel (0) target = $region13
    $region12: #{tpu_custom_call.1} parent=1 // pred_region
      %21 = vsyncadd [#allocation3], 0
      %s22 = sshll.u32 %s2, 4
      %s23 = int_to_ptr.hbm [resolvable:$true] %s22
      %s24 = sshll.u32 [#allocation2], 4
      %s25 = int_to_ptr.vmem [resolvable:$true] %s24
      %30 = dma.hbm_to_vmem [thread:$0]  %s23, 4096, %s25, [#allocation3], 128, 128, 8
    $region13: #{tpu_custom_call.1} parent=1 // pred_fallthru
      _
    // Predicated region
    $region14: #{tpu_custom_call.1} parent=1 // pred_check
      _
    $region15: #{tpu_custom_call.1} parent=1 // pred_check_branch
      %32 = sbr.rel (0) target = $region17
    $region16: #{tpu_custom_call.1} parent=1 // pred_region
      _
    $region17: #{tpu_custom_call.1} parent=1 // pred_fallthru
      _
    // Predicated region
    $region18: #{tpu_custom_call.1} parent=1 // pred_check
      _
    $region19: #{tpu_custom_call.1} parent=1 // pred_check_branch
      %34 = sbr.rel (0) target = $region21
    $region20: #{tpu_custom_call.1} parent=1 // pred_region
      _
    $region21: #{tpu_custom_call.1} parent=1 // pred_fallthru
      _
    // Predicated region
    $region22: #{tpu_custom_call.1} parent=1 // pred_check
      _
    $region23: #{tpu_custom_call.1} parent=1 // pred_check_branch
      %36 = sbr.rel (0) target = $region25
    $region24: #{tpu_custom_call.1} parent=1 // pred_region
      _
    $region25: #{tpu_custom_call.1} parent=1 // pred_fallthru
      _
    // Predicated region
    $region26: #{tpu_custom_call.1} parent=1 // pred_check
      _
    $region27: #{tpu_custom_call.1} parent=1 // pred_check_branch
      %38 = sbr.rel (0) target = $region29
    $region28: #{tpu_custom_call.1} parent=1 // pred_region
      %40 = vsyncadd [#allocation5], 0
      %s42 = sshll.u32 %s6, 4
      %s43 = int_to_ptr.hbm [resolvable:$true] %s42
      %s44 = sshll.u32 [#allocation4], 4
      %s45 = int_to_ptr.vmem [resolvable:$true] %s44
      %47 = dma.hbm_to_vmem [thread:$0]  %s43, 256, %s45, [#allocation5]
    $region29: #{tpu_custom_call.1} parent=1 // pred_fallthru
      _
    // Predicated region
    $region30: #{tpu_custom_call.1} parent=1 // pred_check
      _
    $region31: #{tpu_custom_call.1} parent=1 // pred_check_branch
      %49 = sbr.rel (0) target = $region33
    $region32: #{tpu_custom_call.1} parent=1 // pred_region
      %51 = dma.done [#allocation3], 4096
    $region33: #{tpu_custom_call.1} parent=1 // pred_fallthru
      _
    // Predicated region
    $region34: #{tpu_custom_call.1} parent=1 // pred_check
      _
    $region35: #{tpu_custom_call.1} parent=1 // pred_check_branch
      %53 = sbr.rel (0) target = $region37
    $region36: #{tpu_custom_call.1} parent=1 // pred_region
      %55 = dma.done [#allocation5], 256
    $region37: #{tpu_custom_call.1} parent=1 // pred_fallthru
      _
    %v57 = vld [vmem:[%s0] sm:$0xff]
    %v58 = vld [vmem:[%s0 + $0x8] sm:$0xff]
    %v59 = vld [vmem:[#allocation2] sm:$0xff]
    %v60 = vld [vmem:[#allocation2 + $0x8] sm:$0xff]
    %v61 = vld [vmem:[#allocation2 + $0x10] sm:$0xff]
    %v62 = vld [vmem:[#allocation2 + $0x18] sm:$0xff]
    %v63 = vld [vmem:[#allocation2 + $0x20] sm:$0xff]
    %v64 = vld [vmem:[#allocation2 + $0x28] sm:$0xff]
    %v65 = vld [vmem:[#allocation2 + $0x30] sm:$0xff]
    %v66 = vld [vmem:[#allocation2 + $0x38] sm:$0xff]
    %v67 = vld [vmem:[#allocation2 + $0x40] sm:$0xff]
    %v68 = vld [vmem:[#allocation2 + $0x48] sm:$0xff]
    %v69 = vld [vmem:[#allocation2 + $0x50] sm:$0xff]
    %v70 = vld [vmem:[#allocation2 + $0x58] sm:$0xff]
    %v71 = vld [vmem:[#allocation2 + $0x60] sm:$0xff]
    %v72 = vld [vmem:[#allocation2 + $0x68] sm:$0xff]
    %v73 = vld [vmem:[#allocation2 + $0x70] sm:$0xff]
    %v74 = vld [vmem:[#allocation2 + $0x78] sm:$0xff]
    %v75 = vld [vmem:[#allocation2 + $0x80] sm:$0xff]
    %v76 = vld [vmem:[#allocation2 + $0x88] sm:$0xff]
    %v77 = vld [vmem:[#allocation2 + $0x90] sm:$0xff]
    %v78 = vld [vmem:[#allocation2 + $0x98] sm:$0xff]
    %v79 = vld [vmem:[#allocation2 + $0xa0] sm:$0xff]
    %v80 = vld [vmem:[#allocation2 + $0xa8] sm:$0xff]
    %v81 = vld [vmem:[#allocation2 + $0xb0] sm:$0xff]
    %v82 = vld [vmem:[#allocation2 + $0xb8] sm:$0xff]
    %v83 = vld [vmem:[#allocation2 + $0xc0] sm:$0xff]
    %v84 = vld [vmem:[#allocation2 + $0xc8] sm:$0xff]
    %v85 = vld [vmem:[#allocation2 + $0xd0] sm:$0xff]
    %v86 = vld [vmem:[#allocation2 + $0xd8] sm:$0xff]
    %v87 = vld [vmem:[#allocation2 + $0xe0] sm:$0xff]
    %v88 = vld [vmem:[#allocation2 + $0xe8] sm:$0xff]
    %v89 = vld [vmem:[#allocation2 + $0xf0] sm:$0xff]
    %v90 = vld [vmem:[#allocation2 + $0xf8] sm:$0xff]
    %v91 = vld [vmem:[#allocation4] ss:$8 sm:$0x3]
    %v93 = vperm.slane %v91, 0
    %v94 = vperm.slane %v91, 1
    %v99 = vunpack.c.l.b16 %v57
    %v100 = vunpack.c.h.b16 %v57
    %v101 = vunpack.c.l.b16 %v58
    %v102 = vunpack.c.h.b16 %v58
    %v103 = vpack.c.b16 %v101, %v99
    %v104 = vpack.c.b16 %v102, %v100
    %v139 = vunpack.c.l.b16 %v59
    %v140 = vunpack.c.h.b16 %v59
    %v141 = vunpack.c.l.b16 %v60
    %v142 = vunpack.c.h.b16 %v60
    %v143 = vunpack.c.l.b16 %v61
    %v144 = vunpack.c.h.b16 %v61
    %v145 = vunpack.c.l.b16 %v62
    %v146 = vunpack.c.h.b16 %v62
    %v147 = vunpack.c.l.b16 %v63
    %v148 = vunpack.c.h.b16 %v63
    %v149 = vunpack.c.l.b16 %v64
    %v150 = vunpack.c.h.b16 %v64
    %v151 = vunpack.c.l.b16 %v65
    %v152 = vunpack.c.h.b16 %v65
    %v153 = vunpack.c.l.b16 %v66
    %v154 = vunpack.c.h.b16 %v66
    %v155 = vunpack.c.l.b16 %v67
    %v156 = vunpack.c.h.b16 %v67
    %v157 = vunpack.c.l.b16 %v68
    %v158 = vunpack.c.h.b16 %v68
    %v159 = vunpack.c.l.b16 %v69
    %v160 = vunpack.c.h.b16 %v69
    %v161 = vunpack.c.l.b16 %v70
    %v162 = vunpack.c.h.b16 %v70
    %v163 = vunpack.c.l.b16 %v71
    %v164 = vunpack.c.h.b16 %v71
    %v165 = vunpack.c.l.b16 %v72
    %v166 = vunpack.c.h.b16 %v72
    %v167 = vunpack.c.l.b16 %v73
    %v168 = vunpack.c.h.b16 %v73
    %v169 = vunpack.c.l.b16 %v74
    %v170 = vunpack.c.h.b16 %v74
    %v171 = vunpack.c.l.b16 %v75
    %v172 = vunpack.c.h.b16 %v75
    %v173 = vunpack.c.l.b16 %v76
    %v174 = vunpack.c.h.b16 %v76
    %v175 = vunpack.c.l.b16 %v77
    %v176 = vunpack.c.h.b16 %v77
    %v177 = vunpack.c.l.b16 %v78
    %v178 = vunpack.c.h.b16 %v78
    %v179 = vunpack.c.l.b16 %v79
    %v180 = vunpack.c.h.b16 %v79
    %v181 = vunpack.c.l.b16 %v80
    %v182 = vunpack.c.h.b16 %v80
    %v183 = vunpack.c.l.b16 %v81
    %v184 = vunpack.c.h.b16 %v81
    %v185 = vunpack.c.l.b16 %v82
    %v186 = vunpack.c.h.b16 %v82
    %v187 = vunpack.c.l.b16 %v83
    %v188 = vunpack.c.h.b16 %v83
    %v189 = vunpack.c.l.b16 %v84
    %v190 = vunpack.c.h.b16 %v84
    %v191 = vunpack.c.l.b16 %v85
    %v192 = vunpack.c.h.b16 %v85
    %v193 = vunpack.c.l.b16 %v86
    %v194 = vunpack.c.h.b16 %v86
    %v195 = vunpack.c.l.b16 %v87
    %v196 = vunpack.c.h.b16 %v87
    %v197 = vunpack.c.l.b16 %v88
    %v198 = vunpack.c.h.b16 %v88
    %v199 = vunpack.c.l.b16 %v89
    %v200 = vunpack.c.h.b16 %v89
    %v201 = vunpack.c.l.b16 %v90
    %v202 = vunpack.c.h.b16 %v90
    %v203 = vpack.c.b16 %v141, %v139
    %v204 = vpack.c.b16 %v142, %v140
    %v205 = vpack.c.b16 %v145, %v143
    %v206 = vpack.c.b16 %v146, %v144
    %v207 = vpack.c.b16 %v149, %v147
    %v208 = vpack.c.b16 %v150, %v148
    %v209 = vpack.c.b16 %v153, %v151
    %v210 = vpack.c.b16 %v154, %v152
    %v211 = vpack.c.b16 %v157, %v155
    %v212 = vpack.c.b16 %v158, %v156
    %v213 = vpack.c.b16 %v161, %v159
    %v214 = vpack.c.b16 %v162, %v160
    %v215 = vpack.c.b16 %v165, %v163
    %v216 = vpack.c.b16 %v166, %v164
    %v217 = vpack.c.b16 %v169, %v167
    %v218 = vpack.c.b16 %v170, %v168
    %v219 = vpack.c.b16 %v173, %v171
    %v220 = vpack.c.b16 %v174, %v172
    %v221 = vpack.c.b16 %v177, %v175
    %v222 = vpack.c.b16 %v178, %v176
    %v223 = vpack.c.b16 %v181, %v179
    %v224 = vpack.c.b16 %v182, %v180
    %v225 = vpack.c.b16 %v185, %v183
    %v226 = vpack.c.b16 %v186, %v184
    %v227 = vpack.c.b16 %v189, %v187
    %v228 = vpack.c.b16 %v190, %v188
    %v229 = vpack.c.b16 %v193, %v191
    %v230 = vpack.c.b16 %v194, %v192
    %v231 = vpack.c.b16 %v197, %v195
    %v232 = vpack.c.b16 %v198, %v196
    %v233 = vpack.c.b16 %v201, %v199
    %v234 = vpack.c.b16 %v202, %v200
    %267 = vmatpush.bf16.msra.mxu0 %v217
    %268 = vmatpush.bf16.msra.mxu0 %v215
    %269 = vmatpush.bf16.msra.mxu0 %v213
    %270 = vmatpush.bf16.msra.mxu0 %v211
    %271 = vmatpush.bf16.msra.mxu0 %v209
    %272 = vmatpush.bf16.msra.mxu0 %v207
    %273 = vmatpush.bf16.msra.mxu0 %v205
    %274 = vmatpush.bf16.msra.mxu0 %v203
    %275 = vmatmul.bf16.gmra.mxu0 %v103
    %v276 = vpop.f32.mrf.mxu0
    %v277 = vadd.f32 %v93, %v276
    %v278 = vpop.f32.mrf.mxu0
    %v279 = vadd.f32 %v93, %v278
    %280 = vdwg.mxu0
    %281 = vmatpush.bf16.msra.mxu0 %v233
    %282 = vmatpush.bf16.msra.mxu0 %v231
    %283 = vmatpush.bf16.msra.mxu0 %v229
    %284 = vmatpush.bf16.msra.mxu0 %v227
    %285 = vmatpush.bf16.msra.mxu0 %v225
    %286 = vmatpush.bf16.msra.mxu0 %v223
    %287 = vmatpush.bf16.msra.mxu0 %v221
    %288 = vmatpush.bf16.msra.mxu0 %v219
    %289 = vmatmul.bf16.gmra.mxu0 %v104
    %v290 = vpop.f32.mrf.mxu0
    %v291 = vadd.f32 %v277, %v290
    %v292 = vpop.f32.mrf.mxu0
    %v293 = vadd.f32 %v279, %v292
    %294 = vdwg.mxu0
    %295 = vmatpush.bf16.msra.mxu0 %v218
    %296 = vmatpush.bf16.msra.mxu0 %v216
    %297 = vmatpush.bf16.msra.mxu0 %v214
    %298 = vmatpush.bf16.msra.mxu0 %v212
    %299 = vmatpush.bf16.msra.mxu0 %v210
    %300 = vmatpush.bf16.msra.mxu0 %v208
    %301 = vmatpush.bf16.msra.mxu0 %v206
    %302 = vmatpush.bf16.msra.mxu0 %v204
    %303 = vmatmul.bf16.gmra.mxu0 %v103
    %v304 = vpop.f32.mrf.mxu0
    %v305 = vadd.f32 %v94, %v304
    %v306 = vpop.f32.mrf.mxu0
    %v307 = vadd.f32 %v94, %v306
    %308 = vdwg.mxu0
    %309 = vmatpush.bf16.msra.mxu0 %v234
    %310 = vmatpush.bf16.msra.mxu0 %v232
    %311 = vmatpush.bf16.msra.mxu0 %v230
    %312 = vmatpush.bf16.msra.mxu0 %v228
    %313 = vmatpush.bf16.msra.mxu0 %v226
    %314 = vmatpush.bf16.msra.mxu0 %v224
    %315 = vmatpush.bf16.msra.mxu0 %v222
    %316 = vmatpush.bf16.msra.mxu0 %v220
    %317 = vmatmul.bf16.gmra.mxu0 %v104
    %v318 = vpop.f32.mrf.mxu0
    %v319 = vadd.f32 %v305, %v318
    %v320 = vpop.f32.mrf.mxu0
    %v321 = vadd.f32 %v307, %v320
    %322 = vdwg.mxu0
    %vm323 = vcmp.gt.f32.partialorder %v291, 0.0
    %vm324 = vcmp.gt.f32.partialorder %v319, 0.0
    %vm325 = vcmp.gt.f32.partialorder %v293, 0.0
    %vm326 = vcmp.gt.f32.partialorder %v321, 0.0
    %v327 = vmul.f32 %v291, 0.2
    %v328 = vmul.f32 %v319, 0.2
    %v329 = vmul.f32 %v293, 0.2
    %v330 = vmul.f32 %v321, 0.2
    %v331 = vsel %vm323, %v291, %v327
    %v332 = vsel %vm324, %v319, %v328
    %v333 = vsel %vm325, %v293, %v329
    %v334 = vsel %vm326, %v321, %v330
    %v335 = vpack.c.bf16 %v333, %v331
    %v336 = vpack.c.bf16 %v334, %v332
    %v337 = vld [vmem:[%s3] sm:$0xf]
    %v338 = vld [vmem:[%s3 + $0x4] sm:$0xf]
    %v339 = vld [vmem:[%s3 + $0x8] sm:$0xf]
    %v340 = vld [vmem:[%s3 + $0xc] sm:$0xf]
    %v341 = vld [vmem:[%s3 + $0x10] sm:$0xf]
    %v342 = vld [vmem:[%s3 + $0x14] sm:$0xf]
    %v343 = vld [vmem:[%s3 + $0x18] sm:$0xf]
    %v344 = vld [vmem:[%s3 + $0x1c] sm:$0xf]
    %v345 = vld [vmem:[%s3 + $0x20] sm:$0xf]
    %v346 = vld [vmem:[%s3 + $0x24] sm:$0xf]
    %v347 = vld [vmem:[%s3 + $0x28] sm:$0xf]
    %v348 = vld [vmem:[%s3 + $0x2c] sm:$0xf]
    %v349 = vld [vmem:[%s3 + $0x30] sm:$0xf]
    %v350 = vld [vmem:[%s3 + $0x34] sm:$0xf]
    %v351 = vld [vmem:[%s3 + $0x38] sm:$0xf]
    %v352 = vld [vmem:[%s3 + $0x3c] sm:$0xf]
    %v353 = vld [vmem:[%s3 + $0x40] sm:$0xf]
    %v354 = vld [vmem:[%s3 + $0x44] sm:$0xf]
    %v355 = vld [vmem:[%s3 + $0x48] sm:$0xf]
    %v356 = vld [vmem:[%s3 + $0x4c] sm:$0xf]
    %v357 = vld [vmem:[%s3 + $0x50] sm:$0xf]
    %v358 = vld [vmem:[%s3 + $0x54] sm:$0xf]
    %v359 = vld [vmem:[%s3 + $0x58] sm:$0xf]
    %v360 = vld [vmem:[%s3 + $0x5c] sm:$0xf]
    %v361 = vld [vmem:[%s3 + $0x60] sm:$0xf]
    %v362 = vld [vmem:[%s3 + $0x64] sm:$0xf]
    %v363 = vld [vmem:[%s3 + $0x68] sm:$0xf]
    %v364 = vld [vmem:[%s3 + $0x6c] sm:$0xf]
    %v365 = vld [vmem:[%s3 + $0x70] sm:$0xf]
    %v366 = vld [vmem:[%s3 + $0x74] sm:$0xf]
    %v367 = vld [vmem:[%s3 + $0x78] sm:$0xf]
    %v368 = vld [vmem:[%s3 + $0x7c] sm:$0xf]
    %v369 = vld [vmem:[#allocation4 + $0x1] ss:$0 sm:$0xff]
    %v402 = vunpack.c.l.b16 %v337
    %v403 = vunpack.c.l.b16 %v338
    %v404 = vunpack.c.l.b16 %v339
    %v405 = vunpack.c.l.b16 %v340
    %v406 = vunpack.c.l.b16 %v341
    %v407 = vunpack.c.l.b16 %v342
    %v408 = vunpack.c.l.b16 %v343
    %v409 = vunpack.c.l.b16 %v344
    %v410 = vunpack.c.l.b16 %v345
    %v411 = vunpack.c.l.b16 %v346
    %v412 = vunpack.c.l.b16 %v347
    %v413 = vunpack.c.l.b16 %v348
    %v414 = vunpack.c.l.b16 %v349
    %v415 = vunpack.c.l.b16 %v350
    %v416 = vunpack.c.l.b16 %v351
    %v417 = vunpack.c.l.b16 %v352
    %v418 = vunpack.c.l.b16 %v353
    %v419 = vunpack.c.l.b16 %v354
    %v420 = vunpack.c.l.b16 %v355
    %v421 = vunpack.c.l.b16 %v356
    %v422 = vunpack.c.l.b16 %v357
    %v423 = vunpack.c.l.b16 %v358
    %v424 = vunpack.c.l.b16 %v359
    %v425 = vunpack.c.l.b16 %v360
    %v426 = vunpack.c.l.b16 %v361
    %v427 = vunpack.c.l.b16 %v362
    %v428 = vunpack.c.l.b16 %v363
    %v429 = vunpack.c.l.b16 %v364
    %v430 = vunpack.c.l.b16 %v365
    %v431 = vunpack.c.l.b16 %v366
    %v432 = vunpack.c.l.b16 %v367
    %v433 = vunpack.c.l.b16 %v368
    %v434 = vpack.c.b16 %v403, %v402
    %v435 = vpack.c.b16 %v405, %v404
    %v436 = vpack.c.b16 %v407, %v406
    %v437 = vpack.c.b16 %v409, %v408
    %v438 = vpack.c.b16 %v411, %v410
    %v439 = vpack.c.b16 %v413, %v412
    %v440 = vpack.c.b16 %v415, %v414
    %v441 = vpack.c.b16 %v417, %v416
    %v442 = vpack.c.b16 %v419, %v418
    %v443 = vpack.c.b16 %v421, %v420
    %v444 = vpack.c.b16 %v423, %v422
    %v445 = vpack.c.b16 %v425, %v424
    %v446 = vpack.c.b16 %v427, %v426
    %v447 = vpack.c.b16 %v429, %v428
    %v448 = vpack.c.b16 %v431, %v430
    %v449 = vpack.c.b16 %v433, %v432
    %466 = vmatpush.bf16.msra.mxu0 %v441
    %467 = vmatpush.bf16.msra.mxu0 %v440
    %468 = vmatpush.bf16.msra.mxu0 %v439
    %469 = vmatpush.bf16.msra.mxu0 %v438
    %470 = vmatpush.bf16.msra.mxu0 %v437
    %471 = vmatpush.bf16.msra.mxu0 %v436
    %472 = vmatpush.bf16.msra.mxu0 %v435
    %473 = vmatpush.bf16.msra.mxu0 %v434
    %474 = vmatmul.bf16.gmra.mxu0 %v335
    %v475 = vpop.f32.mrf.mxu0
    %v476 = vadd.f32 %v369, %v475
    %v477 = vpop.f32.mrf.mxu0
    %v478 = vadd.f32 %v369, %v477
    %479 = vdwg.mxu0
    %480 = vmatpush.bf16.msra.mxu0 %v449
    %481 = vmatpush.bf16.msra.mxu0 %v448
    %482 = vmatpush.bf16.msra.mxu0 %v447
    %483 = vmatpush.bf16.msra.mxu0 %v446
    %484 = vmatpush.bf16.msra.mxu0 %v445
    %485 = vmatpush.bf16.msra.mxu0 %v444
    %486 = vmatpush.bf16.msra.mxu0 %v443
    %487 = vmatpush.bf16.msra.mxu0 %v442
    %488 = vmatmul.bf16.gmra.mxu0 %v336
    %v489 = vpop.f32.mrf.mxu0
    %v490 = vadd.f32 %v476, %v489
    %v491 = vpop.f32.mrf.mxu0
    %v492 = vadd.f32 %v478, %v491
    %493 = vdwg.mxu0
    %vm494 = vcmp.gt.f32.partialorder %v490, 0.0
    %vm495 = vcmp.gt.f32.partialorder %v492, 0.0
    %v496 = vmul.f32 %v490, 0.2
    %v497 = vmul.f32 %v492, 0.2
    %v498 = vsel %vm494, %v490, %v496
    %v499 = vsel %vm495, %v492, %v497
    %v500 = vld [vmem:[%s1] sm:$0xff]
    %v501 = vld [vmem:[%s1 + $0x8] sm:$0xff]
    %v502 = vlaneseq
    %v503 = vand.u32 %v502, 127
    %504 = vset.pattern.permute.xlu0 0
    %505 = vperm.xlu0 %504, %v500
    %v506 = vpop.permute.xlu0 %505
    %507 = vset.pattern.permute.xlu0 0
    %508 = vperm.xlu0 %507, %v501
    %v509 = vpop.permute.xlu0 %508
    %vm510 = vcmp.eq.s32.totalorder %v503, %v506
    %vm511 = vcmp.eq.s32.totalorder %v503, %v509
    %v512 = vsel %vm510, 1.0, 0.0
    %v513 = vsel %vm511, 1.0, 0.0
    %v514 = vpack.c.bf16 %v512, %v512
    %v515 = vpack.c.bf16 %v513, %v513
    %v516 = vpack.c.bf16 %v498, %v498
    %v517 = vpack.c.bf16 %v499, %v499
    %v520 = vunpack.c.l.b16 %v516
    %v521 = vunpack.c.l.b16 %v517
    %v522 = vpack.c.b16 %v521, %v520
    %v526 = vunpack.c.l.b16 %v514
    %v527 = vunpack.c.l.b16 %v515
    %v528 = vpack.c.b16 %v527, %v526
    %v530 = vld [vmem:[%s4] sm:$0xf]
    %v531 = vld [vmem:[%s4 + $0x4] sm:$0xf]
    %v532 = vld [vmem:[%s4 + $0x8] sm:$0xf]
    %v533 = vld [vmem:[%s4 + $0xc] sm:$0xf]
    %v534 = vld [vmem:[%s4 + $0x10] sm:$0xf]
    %v535 = vld [vmem:[%s4 + $0x14] sm:$0xf]
    %v536 = vld [vmem:[%s4 + $0x18] sm:$0xf]
    %v537 = vld [vmem:[%s4 + $0x1c] sm:$0xf]
    %v538 = vld [vmem:[%s4 + $0x20] sm:$0xf]
    %v539 = vld [vmem:[%s4 + $0x24] sm:$0xf]
    %v540 = vld [vmem:[%s4 + $0x28] sm:$0xf]
    %v541 = vld [vmem:[%s4 + $0x2c] sm:$0xf]
    %v542 = vld [vmem:[%s4 + $0x30] sm:$0xf]
    %v543 = vld [vmem:[%s4 + $0x34] sm:$0xf]
    %v544 = vld [vmem:[%s4 + $0x38] sm:$0xf]
    %v545 = vld [vmem:[%s4 + $0x3c] sm:$0xf]
    %v546 = vld [vmem:[%s4 + $0x40] sm:$0xf]
    %v547 = vld [vmem:[%s4 + $0x44] sm:$0xf]
    %v548 = vld [vmem:[%s4 + $0x48] sm:$0xf]
    %v549 = vld [vmem:[%s4 + $0x4c] sm:$0xf]
    %v550 = vld [vmem:[%s4 + $0x50] sm:$0xf]
    %v551 = vld [vmem:[%s4 + $0x54] sm:$0xf]
    %v552 = vld [vmem:[%s4 + $0x58] sm:$0xf]
    %v553 = vld [vmem:[%s4 + $0x5c] sm:$0xf]
    %v554 = vld [vmem:[%s4 + $0x60] sm:$0xf]
    %v555 = vld [vmem:[%s4 + $0x64] sm:$0xf]
    %v556 = vld [vmem:[%s4 + $0x68] sm:$0xf]
    %v557 = vld [vmem:[%s4 + $0x6c] sm:$0xf]
    %v558 = vld [vmem:[%s4 + $0x70] sm:$0xf]
    %v559 = vld [vmem:[%s4 + $0x74] sm:$0xf]
    %v560 = vld [vmem:[%s4 + $0x78] sm:$0xf]
    %v561 = vld [vmem:[%s4 + $0x7c] sm:$0xf]
    %v562 = vld [vmem:[#allocation4 + $0x2] ss:$0 sm:$0xff]
    %v595 = vunpack.c.l.b16 %v530
    %v596 = vunpack.c.l.b16 %v531
    %v597 = vunpack.c.l.b16 %v532
    %v598 = vunpack.c.l.b16 %v533
    %v599 = vunpack.c.l.b16 %v534
    %v600 = vunpack.c.l.b16 %v535
    %v601 = vunpack.c.l.b16 %v536
    %v602 = vunpack.c.l.b16 %v537
    %v603 = vunpack.c.l.b16 %v538
    %v604 = vunpack.c.l.b16 %v539
    %v605 = vunpack.c.l.b16 %v540
    %v606 = vunpack.c.l.b16 %v541
    %v607 = vunpack.c.l.b16 %v542
    %v608 = vunpack.c.l.b16 %v543
    %v609 = vunpack.c.l.b16 %v544
    %v610 = vunpack.c.l.b16 %v545
    %v611 = vunpack.c.l.b16 %v546
    %v612 = vunpack.c.l.b16 %v547
    %v613 = vunpack.c.l.b16 %v548
    %v614 = vunpack.c.l.b16 %v549
    %v615 = vunpack.c.l.b16 %v550
    %v616 = vunpack.c.l.b16 %v551
    %v617 = vunpack.c.l.b16 %v552
    %v618 = vunpack.c.l.b16 %v553
    %v619 = vunpack.c.l.b16 %v554
    %v620 = vunpack.c.l.b16 %v555
    %v621 = vunpack.c.l.b16 %v556
    %v622 = vunpack.c.l.b16 %v557
    %v623 = vunpack.c.l.b16 %v558
    %v624 = vunpack.c.l.b16 %v559
    %v625 = vunpack.c.l.b16 %v560
    %v626 = vunpack.c.l.b16 %v561
    %v627 = vpack.c.b16 %v596, %v595
    %v628 = vpack.c.b16 %v598, %v597
    %v629 = vpack.c.b16 %v600, %v599
    %v630 = vpack.c.b16 %v602, %v601
    %v631 = vpack.c.b16 %v604, %v603
    %v632 = vpack.c.b16 %v606, %v605
    %v633 = vpack.c.b16 %v608, %v607
    %v634 = vpack.c.b16 %v610, %v609
    %v635 = vpack.c.b16 %v612, %v611
    %v636 = vpack.c.b16 %v614, %v613
    %v637 = vpack.c.b16 %v616, %v615
    %v638 = vpack.c.b16 %v618, %v617
    %v639 = vpack.c.b16 %v620, %v619
    %v640 = vpack.c.b16 %v622, %v621
    %v641 = vpack.c.b16 %v624, %v623
    %v642 = vpack.c.b16 %v626, %v625
    %659 = vmatpush.bf16.msra.mxu0 %v634
    %660 = vmatpush.bf16.msra.mxu0 %v633
    %661 = vmatpush.bf16.msra.mxu0 %v632
    %662 = vmatpush.bf16.msra.mxu0 %v631
    %663 = vmatpush.bf16.msra.mxu0 %v630
    %664 = vmatpush.bf16.msra.mxu0 %v629
    %665 = vmatpush.bf16.msra.mxu0 %v628
    %666 = vmatpush.bf16.msra.mxu0 %v627
    %667 = vmatmul.bf16.gmra.mxu0 %v522
    %v668 = vpop.f32.mrf.mxu0
    %v669 = vadd.f32 %v562, %v668
    %v670 = vpop.f32.mrf.mxu0
    %v671 = vadd.f32 %v562, %v670
    %672 = vdwg.mxu0
    %673 = vmatpush.bf16.msra.mxu0 %v642
    %674 = vmatpush.bf16.msra.mxu0 %v641
    %675 = vmatpush.bf16.msra.mxu0 %v640
    %676 = vmatpush.bf16.msra.mxu0 %v639
    %677 = vmatpush.bf16.msra.mxu0 %v638
    %678 = vmatpush.bf16.msra.mxu0 %v637
    %679 = vmatpush.bf16.msra.mxu0 %v636
    %680 = vmatpush.bf16.msra.mxu0 %v635
    %681 = vmatmul.bf16.gmra.mxu0 %v528
    %v682 = vpop.f32.mrf.mxu0
    %v683 = vadd.f32 %v669, %v682
    %v684 = vpop.f32.mrf.mxu0
    %v685 = vadd.f32 %v671, %v684
    %686 = vdwg.mxu0
    %vm687 = vcmp.gt.f32.partialorder %v683, 0.0
    %vm688 = vcmp.gt.f32.partialorder %v685, 0.0
    %v689 = vmul.f32 %v683, 0.2
    %v690 = vmul.f32 %v685, 0.2
    %v691 = vsel %vm687, %v683, %v689
    %v692 = vsel %vm688, %v685, %v690
    %v693 = vld [vmem:[%s5] sm:$0xf]
    %v694 = vld [vmem:[%s5 + $0x4] sm:$0xf]
    %v695 = vld [vmem:[%s5 + $0x8] sm:$0xf]
    %v696 = vld [vmem:[%s5 + $0xc] sm:$0xf]
    %v697 = vld [vmem:[%s5 + $0x10] sm:$0xf]
    %v698 = vld [vmem:[%s5 + $0x14] sm:$0xf]
    %v699 = vld [vmem:[%s5 + $0x18] sm:$0xf]
    %v700 = vpack.c.bf16 %v692, %v691
    %v701 = vld [vmem:[#allocation4 + $0x3] ss:$0 sm:$0xff]
    %v706 = vunpack.c.l.b16 %v693
    %v707 = vunpack.c.l.b16 %v694
    %v708 = vunpack.c.l.b16 %v695
    %v709 = vunpack.c.l.b16 %v696
    %v710 = vpack.c.b16 %v707, %v706
    %v711 = vpack.c.b16 %v709, %v708
    %vm714 = vcmask 261120
    %v716 = vsel %vm714, %v700, 0
    %718 = vmatpush.bf16.msra.mxu0 0
    %719 = vmatpush.bf16.msra.mxu0 0
    %720 = vmatpush.bf16.msra.mxu0 0
    %721 = vmatpush.bf16.msra.mxu0 0
    %722 = vmatpush.bf16.msra.mxu0 0
    %723 = vmatpush.bf16.msra.mxu0 0
    %724 = vmatpush.bf16.msra.mxu0 %v711
    %725 = vmatpush.bf16.msra.mxu0 %v710
    %726 = vmatmul.bf16.gmra.mxu0 %v716
    %v727 = vpop.f32.mrf.mxu0
    %v728 = vadd.f32 %v701, %v727
    %v729 = vpop.f32.mrf.mxu0
    %v730 = vadd.f32 %v701, %v729
    %731 = vdwg.mxu0
    %vm732 = vcmp.gt.f32.partialorder %v728, 0.0
    %vm733 = vcmp.gt.f32.partialorder %v730, 0.0
    %v734 = vmul.f32 %v728, 0.2
    %v735 = vmul.f32 %v730, 0.2
    %v736 = vsel %vm732, %v728, %v734
    %v737 = vsel %vm733, %v730, %v735
    %v738 = vpack.c.bf16 %v737, %v736
    %v739 = vld [vmem:[#allocation4 + $0x4] ss:$0 sm:$0xff]
    %v742 = vunpack.c.l.b16 %v697
    %v743 = vunpack.c.l.b16 %v698
    %v744 = vpack.c.b16 %v743, %v742
    %vm746 = vcmask 130048
    %v748 = vsel %vm746, %v738, 0
    %750 = vmatpush.bf16.msra.mxu0 0
    %751 = vmatpush.bf16.msra.mxu0 0
    %752 = vmatpush.bf16.msra.mxu0 0
    %753 = vmatpush.bf16.msra.mxu0 0
    %754 = vmatpush.bf16.msra.mxu0 0
    %755 = vmatpush.bf16.msra.mxu0 0
    %756 = vmatpush.bf16.msra.mxu0 0
    %757 = vmatpush.bf16.msra.mxu0 %v744
    %758 = vmatmul.bf16.gmra.mxu0 %v748
    %v759 = vpop.f32.mrf.mxu0
    %v760 = vadd.f32 %v739, %v759
    %v761 = vpop.f32.mrf.mxu0
    %v762 = vadd.f32 %v739, %v761
    %763 = vdwg.mxu0
    %vm764 = vcmp.gt.f32.partialorder %v760, 0.0
    %vm765 = vcmp.gt.f32.partialorder %v762, 0.0
    %v766 = vmul.f32 %v760, 0.2
    %v767 = vmul.f32 %v762, 0.2
    %v768 = vsel %vm764, %v760, %v766
    %v769 = vsel %vm765, %v762, %v767
    %v770 = vpack.c.bf16 %v769, %v768
    %v771 = vld [vmem:[#allocation4 + $0x5] ss:$0 sm:$0xff]
    %vm772 = vcmask 64512
    %v774 = vsel %vm772, %v770, 0
    %vm776 = vcmask 1043456
    %v778 = vsel %vm776, %v699, 0
    %780 = vmatpush.bf16.msra.mxu0 0
    %781 = vmatpush.bf16.msra.mxu0 0
    %782 = vmatpush.bf16.msra.mxu0 0
    %783 = vmatpush.bf16.msra.mxu0 0
    %784 = vmatpush.bf16.msra.mxu0 0
    %785 = vmatpush.bf16.msra.mxu0 0
    %786 = vmatpush.bf16.msra.mxu0 0
    %787 = vmatpush.bf16.msra.mxu0 %v778
    %788 = vmatmul.bf16.gmra.mxu0 %v774
    %v789 = vpop.f32.mrf.mxu0
    %v790 = vadd.f32 %v771, %v789
    %v791 = vpop.f32.mrf.mxu0
    %v792 = vadd.f32 %v771, %v791
    %793 = vdwg.mxu0
    %v794 = vmax.f32 %v790, -30.0
    %v795 = vmax.f32 %v792, -30.0
    %v796 = vmin.f32 %v794, 30.0
    %v797 = vmin.f32 %v795, 30.0
    %v798 = vsub.f32 0.0, %v796
    %v799 = vsub.f32 0.0, %v797
    %v800 = vmul.f32 %v798, 1.442695
    %v801 = vpow.pop %v800
    %v802 = vmul.f32 %v799, 1.442695
    %v803 = vpow.pop %v802
    %v804 = vadd.f32 %v801, 1.0
    %v805 = vadd.f32 %v803, 1.0
    %v806 = vrcp.pop %v804
    %v807 = vrcp.pop %v805
    %vm808 = vcmask 7168
    %809 = vst.msk [vmem:[%s7] sm:$0xff] %vm808, %v806
    %810 = vst.msk [vmem:[%s7 + $0x8] sm:$0xff] %vm808, %v807
    // Predicated region
    $region38: #{tpu_custom_call.1} parent=1 // pred_check
      _
    $region39: #{tpu_custom_call.1} parent=1 // pred_check_branch
      %812 = sbr.rel (0) target = $region41
    $region40: #{tpu_custom_call.1} parent=1 // pred_region
      _
    $region41: #{tpu_custom_call.1} parent=1 // pred_fallthru
      _
    // Predicated region
    $region42: #{tpu_custom_call.1} parent=1 // pred_check
      _
    $region43: #{tpu_custom_call.1} parent=1 // pred_check_branch
      %814 = sbr.rel (0) target = $region45
    $region44: #{tpu_custom_call.1} parent=1 // pred_region
      _
    $region45: #{tpu_custom_call.1} parent=1 // pred_fallthru
      _
    %815 = vsyncpa [#allocation3], 1
    %816 = vsyncpa [#allocation5], 1

</llo_original>
